<compile_context>
chip_gen: v7x
topology: tpu7x:2x2x1
jax: 0.10.0
libtpu: 0.0.40
codegen_flags: <defaults>
</compile_context>

<pallas_src>
import functools

import jax
import jax.numpy as jnp
from jax.experimental import pallas as pl
from jax.experimental.pallas import tpu as pltpu

# ---------------- config (small, synthetic) ----------------
VOCAB_SIZE = 64
HIDDEN = 128
MAX_POS = 64
TYPE_VOCAB = 4
PAD_TOKEN_ID = 0
LN_EPS = 1e-5          # nn.LayerNorm default
BATCH = 2
SEQ = 8


def _round_up(x, m):
    return ((x + m - 1) // m) * m


def _ernie_emb_kernel(ids_ref, tbl_ref, g_ref, b_ref, o_ref, *,
                      bits_w, bits_p, off_p, off_t):
    """ids_ref: (TQ,1) bit-packed int32; tbl_ref: (Vpad,H) bf16 concat table;
    g_ref/b_ref: (1,H) f32 LN params; o_ref: (TQ,H) output tile."""
    tq = ids_ref.shape[0]
    v = tbl_ref.shape[0]

    packed = ids_ref[...]                                     # (TQ, 1) int32
    w_id = packed & ((1 << bits_w) - 1)
    p_id = ((packed >> bits_w) & ((1 << bits_p) - 1)) + off_p
    t_id = (packed >> (bits_w + bits_p)) + off_t

    # One-hot over the concatenated vocab axis; the three segments are
    # disjoint so OR-ing the compares gives exactly three 1s per row.
    iota = jax.lax.broadcasted_iota(jnp.int32, (tq, v), 1)
    hit = (w_id == iota) | (p_id == iota) | (t_id == iota)     # (TQ, V) bool
    one_hot = hit.astype(tbl_ref.dtype)                        # bool -> bf16

    # Single fused MXU gather + sum of the three embeddings (f32 accumulate
    # of exact 0/1 bf16 one-hot rows reproduces the bf16 table rows exactly).
    x = jnp.dot(one_hot, tbl_ref[...],
                preferred_element_type=jnp.float32)            # (TQ, H) f32

    # Fused LayerNorm over the hidden axis, in f32.
    mean = jnp.mean(x, axis=-1, keepdims=True)
    cx = x - mean
    var = jnp.mean(cx * cx, axis=-1, keepdims=True)
    y = cx * jax.lax.rsqrt(var + LN_EPS)
    o_ref[...] = (y * g_ref[...] + b_ref[...]).astype(o_ref.dtype)


def ernie_embeddings(input_ids, word_emb, pos_emb, tok_emb, gamma, beta,
                     token_type_ids=None, position_ids=None,
                     tq=512, out_dtype=jnp.bfloat16):
    """input_ids: [B, S] int32. Tables: [V, H]. Returns [B, S, H] out_dtype."""
    B, S = input_ids.shape
    V_word, H = word_emb.shape
    V_pos = pos_emb.shape[0]
    V_type = tok_emb.shape[0]
    N = B * S

    if position_ids is None:
        # cumsum(ones) - 1 == arange(S), broadcast over batch
        position_ids = jnp.broadcast_to(jnp.arange(S, dtype=jnp.int32), (B, S))
    if token_type_ids is None:
        token_type_ids = jnp.zeros((B, S), dtype=jnp.int32)

    # ---- token tile size: amortize grid-step overhead, keep (8,128) stores,
    # and keep >= 2 grid steps so "parallel" shards across both TCs on v7x.
    n8 = _round_up(N, 8)
    tq = _round_up(min(tq, n8), 8)
    if n8 // tq < 2 and n8 >= 16:
        tq = _round_up((n8 + 1) // 2, 8)
    n_pad = _round_up(N, tq)

    # ---- bit-pack the three id streams into ONE int32 per token (one small
    # DMA per grid step instead of three).
    bits_w = max((V_word - 1).bit_length(), 1)
    bits_p = max((V_pos - 1).bit_length(), 1)
    bits_t = max((V_type - 1).bit_length(), 1)
    if bits_w + bits_p + bits_t > 31:
        # TODO(synk): fall back to separate id columns / DMA row-gather for
        # vocabularies too large to bit-pack into one int32.
        raise NotImplementedError("id streams do not fit one int32")
    w = input_ids.reshape(N).astype(jnp.int32)
    p = position_ids.reshape(N).astype(jnp.int32)
    t = token_type_ids.reshape(N).astype(jnp.int32)
    packed = w | (p << bits_w) | (t << (bits_w + bits_p))
    packed = jnp.pad(packed, (0, n_pad - N)).reshape(n_pad, 1)

    # ---- concatenated bf16 table, VMEM-resident; pad rows to a multiple of
    # 16 (bf16 packs 2 rows per sublane).
    table = jnp.concatenate([word_emb.astype(jnp.bfloat16),
                             pos_emb.astype(jnp.bfloat16),
                             tok_emb.astype(jnp.bfloat16)], axis=0)
    v_total = V_word + V_pos + V_type
    v_pad = _round_up(v_total, 16)
    table = jnp.pad(table, ((0, v_pad - v_total), (0, 0)))

    gamma2 = gamma.reshape(1, H).astype(jnp.float32)
    beta2 = beta.reshape(1, H).astype(jnp.float32)

    kernel = functools.partial(_ernie_emb_kernel,
                               bits_w=bits_w, bits_p=bits_p,
                               off_p=V_word, off_t=V_word + V_pos)

    vmem_resident = pl.BlockSpec(memory_space=pltpu.MemorySpace.VMEM)
    grid_spec = pltpu.PrefetchScalarGridSpec(
        num_scalar_prefetch=0,
        grid=(n_pad // tq,),
        in_specs=[
            pl.BlockSpec((tq, 1), lambda i: (i, 0)),   # packed id tile
            vmem_resident,                             # concat table (whole)
            vmem_resident,                             # gamma
            vmem_resident,                             # beta
        ],
        out_specs=pl.BlockSpec((tq, H), lambda i: (i, 0)),
    )

    out_flat = pl.pallas_call(
        kernel,
        out_shape=jax.ShapeDtypeStruct((n_pad, H), out_dtype),
        grid_spec=grid_spec,
        compiler_params=pltpu.CompilerParams(
            dimension_semantics=("parallel",)),
    )(packed, table, gamma2, beta2)

    return out_flat[:N].reshape(B, S, H)


def _reference(input_ids, word_emb, pos_emb, tok_emb, gamma, beta):
    B, S = input_ids.shape
    position_ids = jnp.broadcast_to(jnp.arange(S, dtype=jnp.int32), (B, S))
    token_type_ids = jnp.zeros((B, S), dtype=jnp.int32)
    x = (jnp.take(word_emb, input_ids, axis=0).astype(jnp.float32)
         + jnp.take(pos_emb, position_ids, axis=0).astype(jnp.float32)
         + jnp.take(tok_emb, token_type_ids, axis=0).astype(jnp.float32))
    mean = jnp.mean(x, axis=-1, keepdims=True)
    var = jnp.mean((x - mean) ** 2, axis=-1, keepdims=True)
    y = (x - mean) * jax.lax.rsqrt(var + LN_EPS)
    return y * gamma + beta


if __name__ == "__main__":
    key = jax.random.PRNGKey(0)
    k_w, k_p, k_t, k_g, k_b, k_ids = jax.random.split(key, 6)

    # Parameters stored in bf16 (memory-bound kernel: halves table bytes);
    # all LayerNorm math stays in f32 inside the kernel and the reference.
    word_emb = (jax.random.normal(k_w, (VOCAB_SIZE, HIDDEN), jnp.float32)
                * 0.02).astype(jnp.bfloat16)
    # padding_idx semantics: pad row is zero
    word_emb = word_emb.at[PAD_TOKEN_ID].set(0.0)
    pos_emb = (jax.random.normal(k_p, (MAX_POS, HIDDEN), jnp.float32)
               * 0.02).astype(jnp.bfloat16)
    tok_emb = (jax.random.normal(k_t, (TYPE_VOCAB, HIDDEN), jnp.float32)
               * 0.02).astype(jnp.bfloat16)
    gamma = 1.0 + 0.1 * jax.random.normal(k_g, (HIDDEN,), jnp.float32)
    beta = 0.1 * jax.random.normal(k_b, (HIDDEN,), jnp.float32)

    input_ids = jax.random.randint(k_ids, (BATCH, SEQ), 0, VOCAB_SIZE, jnp.int32)

    ref = _reference(input_ids, word_emb, pos_emb, tok_emb, gamma, beta)

    # f32-output path: gather + LN are exact / f32, so match is tight.
    out_f32 = ernie_embeddings(input_ids, word_emb, pos_emb, tok_emb,
                               gamma, beta, out_dtype=jnp.float32)
    out_f32 = jax.block_until_ready(out_f32)
    assert out_f32.shape == (BATCH, SEQ, HIDDEN)
    assert jnp.allclose(out_f32, ref, atol=1e-5, rtol=1e-5), "f32 mismatch"

    # bf16-output path (default, halves HBM writeback): only the final cast
    # introduces error.
    out_bf16 = ernie_embeddings(input_ids, word_emb, pos_emb, tok_emb,
                                gamma, beta)
    out_bf16 = jax.block_until_ready(out_bf16)
    assert out_bf16.dtype == jnp.bfloat16
    assert jnp.allclose(out_bf16.astype(jnp.float32), ref,
                        atol=3e-2, rtol=3e-2), "bf16 mismatch"

    print("KERNEL_OK")
</pallas_src>

<mosaic_0001>
module attributes {stable_mosaic.version = 11 : i64} {
  func.func @_ernie_emb_kernel(%arg0: i32, %arg1: memref<8x1xi32, #tpu.memory_space<vmem>>, %arg2: memref<144x128xbf16, #tpu.memory_space<vmem>>, %arg3: memref<1x128xf32, #tpu.memory_space<vmem>>, %arg4: memref<1x128xf32, #tpu.memory_space<vmem>>, %arg5: memref<8x128xf32, #tpu.memory_space<vmem>>) attributes {dimension_semantics = [#tpu.dimension_semantics<parallel>], iteration_bounds = array<i64: 2>, scalar_prefetch = 0 : i64, scratch_operands = 0 : i64, tpu.core_type = #tpu.core_type<tc>, window_params = [{transform_indices = @transform_0, window_bounds = array<i64: 8, 1>}, {pipeline_mode = #tpu.pipeline_mode<synchronous>, transform_indices = @transform_1, window_bounds = array<i64: 144, 128>}, {pipeline_mode = #tpu.pipeline_mode<synchronous>, transform_indices = @transform_2, window_bounds = array<i64: 1, 128>}, {pipeline_mode = #tpu.pipeline_mode<synchronous>, transform_indices = @transform_3, window_bounds = array<i64: 1, 128>}, {transform_indices = @transform_4, window_bounds = array<i64: 8, 128>}]} {
    %c0 = arith.constant 0 : index
    %c0_0 = arith.constant 0 : index
    %0 = vector.load %arg1[%c0, %c0_0] : memref<8x1xi32, #tpu.memory_space<vmem>>, vector<8x1xi32>
    %c63_i32 = arith.constant 63 : i32
    %1 = vector.broadcast %c63_i32 : i32 to vector<8x1xi32>
    %2 = arith.andi %0, %1 : vector<8x1xi32>
    %c6_i32 = arith.constant 6 : i32
    %3 = vector.broadcast %c6_i32 : i32 to vector<8x1xi32>
    %4 = arith.shrsi %0, %3 : vector<8x1xi32>
    %c63_i32_1 = arith.constant 63 : i32
    %5 = vector.broadcast %c63_i32_1 : i32 to vector<8x1xi32>
    %6 = arith.andi %4, %5 : vector<8x1xi32>
    %c64_i32 = arith.constant 64 : i32
    %7 = vector.broadcast %c64_i32 : i32 to vector<8x1xi32>
    %8 = arith.addi %6, %7 : vector<8x1xi32>
    %c12_i32 = arith.constant 12 : i32
    %9 = vector.broadcast %c12_i32 : i32 to vector<8x1xi32>
    %10 = arith.shrsi %0, %9 : vector<8x1xi32>
    %c128_i32 = arith.constant 128 : i32
    %11 = vector.broadcast %c128_i32 : i32 to vector<8x1xi32>
    %12 = arith.addi %10, %11 : vector<8x1xi32>
    %13 = tpu.iota {dimensions = array<i32: 1>} : vector<8x144xi32>
    %14 = vector.broadcast %2 : vector<8x1xi32> to vector<8x144xi32>
    %15 = arith.cmpi eq, %14, %13 : vector<8x144xi32>
    %16 = vector.broadcast %8 : vector<8x1xi32> to vector<8x144xi32>
    %17 = arith.cmpi eq, %16, %13 : vector<8x144xi32>
    %18 = arith.ori %15, %17 : vector<8x144xi1>
    %19 = vector.broadcast %12 : vector<8x1xi32> to vector<8x144xi32>
    %20 = arith.cmpi eq, %19, %13 : vector<8x144xi32>
    %21 = arith.ori %18, %20 : vector<8x144xi1>
    %22 = arith.extui %21 : vector<8x144xi1> to vector<8x144xi32>
    %23 = arith.sitofp %22 : vector<8x144xi32> to vector<8x144xf32>
    %24 = arith.truncf %23 : vector<8x144xf32> to vector<8x144xbf16>
    %c0_2 = arith.constant 0 : index
    %c0_3 = arith.constant 0 : index
    %25 = vector.load %arg2[%c0_2, %c0_3] : memref<144x128xbf16, #tpu.memory_space<vmem>>, vector<144x128xbf16>
    %cst = arith.constant dense<0.000000e+00> : vector<8x128xf32>
    %26 = tpu.matmul %24, %25, %cst {dimension_numbers = #tpu.dot_dimension_numbers<[1], [0], [0], [1], [0, 0, 1, 1], [], []>} : vector<8x144xbf16>, vector<144x128xbf16>, vector<8x128xf32> -> vector<8x128xf32>
    %cst_4 = arith.constant dense<0.000000e+00> : vector<8xf32>
    %27 = vector.multi_reduction <add>, %26, %cst_4 [1] : vector<8x128xf32> to vector<8xf32>
    %28 = vector.shape_cast %27 : vector<8xf32> to vector<8x1xf32>
    %cst_5 = arith.constant 1.280000e+02 : f32
    %29 = vector.broadcast %cst_5 : f32 to vector<8x1xf32>
    %30 = arith.divf %28, %29 : vector<8x1xf32>
    %31 = vector.broadcast %30 : vector<8x1xf32> to vector<8x128xf32>
    %32 = arith.subf %26, %31 : vector<8x128xf32>
    %33 = arith.mulf %32, %32 : vector<8x128xf32>
    %cst_6 = arith.constant dense<0.000000e+00> : vector<8xf32>
    %34 = vector.multi_reduction <add>, %33, %cst_6 [1] : vector<8x128xf32> to vector<8xf32>
    %35 = vector.shape_cast %34 : vector<8xf32> to vector<8x1xf32>
    %cst_7 = arith.constant 1.280000e+02 : f32
    %36 = vector.broadcast %cst_7 : f32 to vector<8x1xf32>
    %37 = arith.divf %35, %36 : vector<8x1xf32>
    %cst_8 = arith.constant 9.99999974E-6 : f32
    %38 = vector.broadcast %cst_8 : f32 to vector<8x1xf32>
    %39 = arith.addf %37, %38 : vector<8x1xf32>
    %40 = math.rsqrt %39 : vector<8x1xf32>
    %41 = vector.broadcast %40 : vector<8x1xf32> to vector<8x128xf32>
    %42 = arith.mulf %32, %41 : vector<8x128xf32>
    %c0_9 = arith.constant 0 : index
    %c0_10 = arith.constant 0 : index
    %43 = vector.load %arg3[%c0_9, %c0_10] : memref<1x128xf32, #tpu.memory_space<vmem>>, vector<1x128xf32>
    %44 = vector.broadcast %43 : vector<1x128xf32> to vector<8x128xf32>
    %45 = arith.mulf %42, %44 : vector<8x128xf32>
    %c0_11 = arith.constant 0 : index
    %c0_12 = arith.constant 0 : index
    %46 = vector.load %arg4[%c0_11, %c0_12] : memref<1x128xf32, #tpu.memory_space<vmem>>, vector<1x128xf32>
    %47 = vector.broadcast %46 : vector<1x128xf32> to vector<8x128xf32>
    %48 = arith.addf %45, %47 : vector<8x128xf32>
    %c0_13 = arith.constant 0 : index
    %c0_14 = arith.constant 0 : index
    %49 = vector.load %arg5[%c0_13, %c0_14] : memref<8x128xf32, #tpu.memory_space<vmem>>, vector<8x128xf32>
    tpu.vector_store %arg5[%c0_13, %c0_14], %48 {strides = array<i32>} : memref<8x128xf32, #tpu.memory_space<vmem>>, vector<8x128xf32>,
    return
  }
  func.func @transform_0(%arg0: i32) -> (i32, i32) {
    %c0_i32 = arith.constant 0 : i32
    %c0_i32_0 = arith.constant 0 : i32
    return %arg0, %c0_i32 : i32, i32
  }
  func.func @transform_1(%arg0: i32) -> (i32, i32) {
    %c0_i32 = arith.constant 0 : i32
    %c0_i32_0 = arith.constant 0 : i32
    %c0_i32_1 = arith.constant 0 : i32
    return %c0_i32, %c0_i32_0 : i32, i32
  }
  func.func @transform_2(%arg0: i32) -> (i32, i32) {
    %c0_i32 = arith.constant 0 : i32
    %c0_i32_0 = arith.constant 0 : i32
    %c0_i32_1 = arith.constant 0 : i32
    return %c0_i32, %c0_i32_0 : i32, i32
  }
  func.func @transform_3(%arg0: i32) -> (i32, i32) {
    %c0_i32 = arith.constant 0 : i32
    %c0_i32_0 = arith.constant 0 : i32
    %c0_i32_1 = arith.constant 0 : i32
    return %c0_i32, %c0_i32_0 : i32, i32
  }
  func.func @transform_4(%arg0: i32) -> (i32, i32) {
    %c0_i32 = arith.constant 0 : i32
    %c0_i32_0 = arith.constant 0 : i32
    return %arg0, %c0_i32 : i32, i32
  }
}

</mosaic_0001>

<llo_original>
// kernel: tpu_custom_call.1
$region0: #{tpu_custom_call.1}
  #allocation0 [shape = 'u32[]', space=smem, size = 0x4, offset = 0x4, fixed_abs, tag = 'smem constant byte address 0x4 - core index']
  #allocation1 [shape = 'u32[144,128]{1,0:T(1,128)}', space=vmem, size = 0x12000, scoped, tag = 'internal scratch']
  %s0 = inlined_call_operand.vmem [shape: s32[16,1], index: 0, kind: input, shape index: {}]
  %s1 = inlined_call_operand.hbm [shape: bf16[144,128], index: 1, kind: input, shape index: {}]
  %s2 = inlined_call_operand.vmem [shape: f32[1,128], index: 2, kind: input, shape index: {}]
  %s3 = inlined_call_operand.vmem [shape: f32[1,128], index: 3, kind: input, shape index: {}]
  %s4 = inlined_call_operand.hbm [shape: f32[16,128], index: 4, kind: output, shape index: {}]
  %s5 = sld [smem:[#allocation0]]
  $region53: #{tpu_custom_call.1} parent=0
    _
  %s7 = ssub.s32 1, %s5
  %s8 = scalar_select 0, %s7, %s5
  $region1: #{tpu_custom_call.1} parent=0
    #allocation2 [shape = 'u8[36864]{0}', space=vmem, size = 0x9000, scoped, tag = 'input window, operand 1, single buffered']
    #allocation3 [shape = 's32[2]{0}', space=sflag, size = 0x8, scoped, tag = 'scoped memory for tpu_custom_call.1']
    #allocation4 [shape = 's32[2]{0}', space=sflag, size = 0x8, scoped, tag = 'scoped memory for tpu_custom_call.1']
    #allocation5 [shape = 'u8[8192]{0}', space=vmem, size = 0x2000, scoped, tag = 'output window, operand 0']
    %9 = vsyncpa [#allocation3], 0
    %10 = vsyncpa [#allocation4], 0
    %s11 = scalar_lea.sflag [#allocation4], 1
    %12 = vsyncpa %s11, 0
    loop: start=0, step=1, limit=4
    $region2: #{tpu_custom_call.1} parent=1 // loop_pre_header
      _
    $region3: #{tpu_custom_call.1} parent=1 // loop_header
      %s14 = sphi 0, %s18
      %p15 = scmp.ge.s32.totalorder %s14, 4
      %s24 = sphi 0, %s26
      %s27 = sphi 0, %s24
      %s28 = sphi 0, %s27
      %s44 = sphi 0, %s28
      %s48 = sphi 0, %s48
      %s50 = sphi 0, %s48
      %s51 = sphi 0, %s50
      %s65 = sphi 0, %s51
      %s69 = sphi 0, %s69
      %s71 = sphi 0, %s69
      %s72 = sphi 0, %s71
      %s86 = sphi 0, %s72
      %s90 = sphi 0, %s90
      %s92 = sphi 0, %s90
      %s93 = sphi 0, %s92
      %s107 = sphi 0, %s93
      %s113 = sphi 0, %s115
      %s116 = sphi 0, %s113
      %s117 = sphi 0, %s116
      %s133 = sphi 0, %s117
    $region4: #{tpu_custom_call.1} parent=1 // loop_header_branch
      %17 = sbr.rel (%p15) target = $region8
    $region5: #{tpu_custom_call.1} parent=1 // loop_body
      %s19 = ssub.s32 %s14, 1
      %s20 = ssub.s32 %s14, 2
      %s21 = sadd.s32 %s14, 1
      %s22 = ssub.s32 %s14, %s21
      %p23 = scmp.eq.s32.totalorder %s22, 0
      %s25 = sadd.s32 %s24, 1
      %s26 = scalar_select %p23, %s24, %s25
      %p29 = pneg %p23
      %p30 = scmp.eq.s32.totalorder %s14, 1
      %p31 = por %p29, %p30
      %p32 = scmp.ne.s32.totalorder %s24, %s27
      %p33 = scmp.eq.s32.totalorder %s14, 0
      %p34 = por %p32, %p33
      %p35 = scmp.ne.s32.totalorder %s24, %s27
      %p36 = scmp.eq.s32.totalorder %s19, 1
      %p37 = por %p35, %p36
      %p38 = scmp.ne.s32.totalorder %s27, %s28
      %p39 = scmp.eq.s32.totalorder %s19, 0
      %p40 = por %p38, %p39
      %p41 = scmp.ne.s32.totalorder %s27, %s28
      %p42 = scmp.eq.s32.totalorder %s20, 1
      %p43 = por %p41, %p42
      %p45 = scmp.ne.s32.totalorder %s28, %s44
      %p46 = scmp.eq.s32.totalorder %s20, 0
      %p47 = por %p45, %p46
      %s49 = sadd.s32 %s48, 1
      %p52 = scmp.eq.s32.totalorder %s14, 1
      %p53 = scmp.ne.s32.totalorder %s48, %s50
      %p54 = scmp.eq.s32.totalorder %s14, 0
      %p55 = por %p53, %p54
      %p56 = scmp.ne.s32.totalorder %s48, %s50
      %p57 = scmp.eq.s32.totalorder %s19, 1
      %p58 = por %p56, %p57
      %p59 = scmp.ne.s32.totalorder %s50, %s51
      %p60 = scmp.eq.s32.totalorder %s19, 0
      %p61 = por %p59, %p60
      %p62 = scmp.ne.s32.totalorder %s50, %s51
      %p63 = scmp.eq.s32.totalorder %s20, 1
      %p64 = por %p62, %p63
      %p66 = scmp.ne.s32.totalorder %s51, %s65
      %p67 = scmp.eq.s32.totalorder %s20, 0
      %p68 = por %p66, %p67
      %s70 = sadd.s32 %s69, 1
      %p73 = scmp.eq.s32.totalorder %s14, 1
      %p74 = scmp.ne.s32.totalorder %s69, %s71
      %p75 = scmp.eq.s32.totalorder %s14, 0
      %p76 = por %p74, %p75
      %p77 = scmp.ne.s32.totalorder %s69, %s71
      %p78 = scmp.eq.s32.totalorder %s19, 1
      %p79 = por %p77, %p78
      %p80 = scmp.ne.s32.totalorder %s71, %s72
      %p81 = scmp.eq.s32.totalorder %s19, 0
      %p82 = por %p80, %p81
      %p83 = scmp.ne.s32.totalorder %s71, %s72
      %p84 = scmp.eq.s32.totalorder %s20, 1
      %p85 = por %p83, %p84
      %p87 = scmp.ne.s32.totalorder %s72, %s86
      %p88 = scmp.eq.s32.totalorder %s20, 0
      %p89 = por %p87, %p88
      %s91 = sadd.s32 %s90, 1
      %p94 = scmp.eq.s32.totalorder %s14, 1
      %p95 = scmp.ne.s32.totalorder %s90, %s92
      %p96 = scmp.eq.s32.totalorder %s14, 0
      %p97 = por %p95, %p96
      %p98 = scmp.ne.s32.totalorder %s90, %s92
      %p99 = scmp.eq.s32.totalorder %s19, 1
      %p100 = por %p98, %p99
      %p101 = scmp.ne.s32.totalorder %s92, %s93
      %p102 = scmp.eq.s32.totalorder %s19, 0
      %p103 = por %p101, %p102
      %p104 = scmp.ne.s32.totalorder %s92, %s93
      %p105 = scmp.eq.s32.totalorder %s20, 1
      %p106 = por %p104, %p105
      %p108 = scmp.ne.s32.totalorder %s93, %s107
      %p109 = scmp.eq.s32.totalorder %s20, 0
      %p110 = por %p108, %p109
      %s111 = ssub.s32 %s14, %s21
      %p112 = scmp.eq.s32.totalorder %s111, 0
      %s114 = sadd.s32 %s113, 1
      %s115 = scalar_select %p112, %s113, %s114
      %p118 = pneg %p112
      %p119 = scmp.eq.s32.totalorder %s14, 1
      %p120 = por %p118, %p119
      %p121 = scmp.ne.s32.totalorder %s113, %s116
      %p122 = scmp.eq.s32.totalorder %s14, 0
      %p123 = por %p121, %p122
      %p124 = scmp.ne.s32.totalorder %s113, %s116
      %p125 = scmp.eq.s32.totalorder %s19, 1
      %p126 = por %p124, %p125
      %p127 = scmp.ne.s32.totalorder %s116, %s117
      %p128 = scmp.eq.s32.totalorder %s19, 0
      %p129 = por %p127, %p128
      %p130 = scmp.ne.s32.totalorder %s116, %s117
      %p131 = scmp.eq.s32.totalorder %s20, 1
      %p132 = por %p130, %p131
      %p134 = scmp.ne.s32.totalorder %s117, %s133
      %p135 = scmp.eq.s32.totalorder %s20, 0
      %p136 = por %p134, %p135
      %p137 = scmp.le.s32.totalorder 1, %s14
      %p138 = scmp.lt.s32.totalorder %s14, 3
      %p139 = pnand %p137, %p138
      %p140 = pneg %p139
      // Predicated region
      $region9: #{tpu_custom_call.1} parent=5 // pred_check
        _
      $region10: #{tpu_custom_call.1} parent=5 // pred_check_branch
        %142 = sbr.rel (%p139) target = $region12
      $region11: #{tpu_custom_call.1} parent=5 // pred_region
        %s143 = ssub.s32 %s14, 1
        // Predicated region
        $region13: #{tpu_custom_call.1} parent=11 // pred_check
          %p144 = pneg %p61
        $region14: #{tpu_custom_call.1} parent=11 // pred_check_branch
          %146 = sbr.rel (%p144) target = $region16
        $region15: #{tpu_custom_call.1} parent=11 // pred_region
          %s148 = ssub.s32 1152, 1152
          %149 = vsyncadd [#allocation3], %s148
          %s150 = sshll.u32 [#allocation2], 4
          %s151 = int_to_ptr.vmem [resolvable:$true] %s150
          %156 = dma.hbm_to_vmem [thread:$0]  %s1, 1152, %s151, [#allocation3], 64, 64, 4
        $region16: #{tpu_custom_call.1} parent=11 // pred_fallthru
          _
        // Predicated region
        $region17: #{tpu_custom_call.1} parent=11 // pred_check
          %p157 = pneg %p82
        $region18: #{tpu_custom_call.1} parent=11 // pred_check_branch
          %159 = sbr.rel (%p157) target = $region20
        $region19: #{tpu_custom_call.1} parent=11 // pred_region
          _
        $region20: #{tpu_custom_call.1} parent=11 // pred_fallthru
          _
        // Predicated region
        $region21: #{tpu_custom_call.1} parent=11 // pred_check
          %p160 = pneg %p103
        $region22: #{tpu_custom_call.1} parent=11 // pred_check_branch
          %162 = sbr.rel (%p160) target = $region24
        $region23: #{tpu_custom_call.1} parent=11 // pred_region
          _
        $region24: #{tpu_custom_call.1} parent=11 // pred_fallthru
          _
      $region12: #{tpu_custom_call.1} parent=5 // pred_fallthru
        _
      %p163 = scmp.lt.s32.totalorder %s14, 2
      // Predicated region
      $region25: #{tpu_custom_call.1} parent=5 // pred_check
        %p164 = pneg %p163
      $region26: #{tpu_custom_call.1} parent=5 // pred_check_branch
        %166 = sbr.rel (%p164) target = $region28
      $region27: #{tpu_custom_call.1} parent=5 // pred_region
        // Predicated region
        $region29: #{tpu_custom_call.1} parent=27 // pred_check
          %p167 = pneg %p34
        $region30: #{tpu_custom_call.1} parent=27 // pred_check_branch
          %169 = sbr.rel (%p167) target = $region32
        $region31: #{tpu_custom_call.1} parent=27 // pred_region
          %p170 = scmp.lt.s32.totalorder %s14, 1
          %s171 = scalar_select %p170, %s14, 1
          %s172 = smul.addr %s171, 8
          %s173 = scalar_lea.vmem %s0, %s172
        $region32: #{tpu_custom_call.1} parent=27 // pred_fallthru
          _
      $region28: #{tpu_custom_call.1} parent=5 // pred_fallthru
        _
      %p174 = scmp.le.s32.totalorder 1, %s14
      %p175 = scmp.lt.s32.totalorder %s14, 3
      %p176 = pnand %p174, %p175
      %p177 = pneg %p176
      // Predicated region
      $region33: #{tpu_custom_call.1} parent=5 // pred_check
        _
      $region34: #{tpu_custom_call.1} parent=5 // pred_check_branch
        %179 = sbr.rel (%p176) target = $region36
      $region35: #{tpu_custom_call.1} parent=5 // pred_region
        %s180 = ssub.s32 %s14, 1
        // Predicated region
        $region37: #{tpu_custom_call.1} parent=35 // pred_check
          %p181 = pneg %p61
        $region38: #{tpu_custom_call.1} parent=35 // pred_check_branch
          %183 = sbr.rel (%p181) target = $region40
        $region39: #{tpu_custom_call.1} parent=35 // pred_region
          %184 = dma.done [#allocation3], 1152
        $region40: #{tpu_custom_call.1} parent=35 // pred_fallthru
          _
        %p185 = scmp.lt.s32.totalorder %s19, 1
        %s186 = scalar_select %p185, %s19, 1
        %s187 = smul.addr %s186, 8
        %s188 = scalar_lea.vmem %s0, %s187
        %p189 = pneg %p40
        %p190 = pneg %p37
        %p191 = pneg %p61
        %p192 = pneg %p58
        %p193 = pneg %p82
        %p194 = pneg %p79
        %p195 = pneg %p103
        %p196 = pneg %p100
        %p197 = pneg %p129
        %p198 = pneg %p126
        %s199 = sand.u32 %s116, 1
        %s200 = scalar_lea.sflag [#allocation4], %s199
        %s201 = sand.u32 %s116, 1
        %s202 = smul.addr %s201, 8
        %s203 = scalar_lea.vmem [#allocation5], %s202
        %p204 = scmp.lt.s32.totalorder %s19, 1
        %s205 = scalar_select %p204, %s19, 1
        %s206 = smul.addr %s205, 8
        %s207 = scalar_lea.vmem %s0, %s206
        %v209 = vld [vmem:[%s207] sm:$0xff]
        %v210 = vand.u32 %v209, 63
        %v211 = vshra.s32 %v209, 6
        %v212 = vand.u32 %v211, 63
        %v213 = vadd.s32 %v212, 64
        %v214 = vshra.s32 %v209, 12
        %v215 = vadd.s32 %v214, 128
        %v216 = vlaneseq
        %v217 = vand.u32 %v216, 127
        %v218 = vadd.s32 %v217, 128
        %219 = vset.pattern.permute.xlu0 0
        %220 = vperm.xlu0 %219, %v210
        %v221 = vpop.permute.xlu0 %220
        %vm222 = vcmp.eq.s32.totalorder %v221, %v217
        %vm223 = vcmp.eq.s32.totalorder %v221, %v218
        %224 = vset.pattern.permute.xlu0 0
        %225 = vperm.xlu0 %224, %v213
        %v226 = vpop.permute.xlu0 %225
        %vm227 = vcmp.eq.s32.totalorder %v226, %v217
        %vm228 = vcmp.eq.s32.totalorder %v226, %v218
        %vm229 = vmor %vm222, %vm227
        %vm230 = vmor %vm223, %vm228
        %231 = vset.pattern.permute.xlu0 0
        %232 = vperm.xlu0 %231, %v215
        %v233 = vpop.permute.xlu0 %232
        %vm234 = vcmp.eq.s32.totalorder %v233, %v217
        %vm235 = vcmp.eq.s32.totalorder %v233, %v218
        %vm236 = vmor %vm229, %vm234
        %vm237 = vmor %vm230, %vm235
        %v238 = vsel %vm236, 1, 0
        %v239 = vsel %vm237, 1, 0
        %v240 = vcvt.s32.f32 %v238
        %v241 = vcvt.s32.f32 %v239
        %v242 = vpack.c.bf16 %v240, %v240
        %v243 = vpack.c.bf16 %v241, %v241
        %v244 = vld [vmem:[#allocation2] sm:$0xf]
        %v245 = vld [vmem:[#allocation2 + $0x4] sm:$0xf]
        %v246 = vld [vmem:[#allocation2 + $0x8] sm:$0xf]
        %v247 = vld [vmem:[#allocation2 + $0xc] sm:$0xf]
        %v248 = vld [vmem:[#allocation2 + $0x10] sm:$0xf]
        %v249 = vld [vmem:[#allocation2 + $0x14] sm:$0xf]
        %v250 = vld [vmem:[#allocation2 + $0x18] sm:$0xf]
        %v251 = vld [vmem:[#allocation2 + $0x1c] sm:$0xf]
        %v252 = vld [vmem:[#allocation2 + $0x20] sm:$0xf]
        %v253 = vld [vmem:[#allocation2 + $0x24] sm:$0xf]
        %v254 = vld [vmem:[#allocation2 + $0x28] sm:$0xf]
        %v255 = vld [vmem:[#allocation2 + $0x2c] sm:$0xf]
        %v256 = vld [vmem:[#allocation2 + $0x30] sm:$0xf]
        %v257 = vld [vmem:[#allocation2 + $0x34] sm:$0xf]
        %v258 = vld [vmem:[#allocation2 + $0x38] sm:$0xf]
        %v259 = vld [vmem:[#allocation2 + $0x3c] sm:$0xf]
        %v260 = vld [vmem:[#allocation2 + $0x40] sm:$0xf]
        %v261 = vld [vmem:[#allocation2 + $0x44] sm:$0xf]
        %v280 = vunpack.c.l.b16 %v244
        %v281 = vunpack.c.l.b16 %v245
        %v282 = vunpack.c.l.b16 %v246
        %v283 = vunpack.c.l.b16 %v247
        %v284 = vunpack.c.l.b16 %v248
        %v285 = vunpack.c.l.b16 %v249
        %v286 = vunpack.c.l.b16 %v250
        %v287 = vunpack.c.l.b16 %v251
        %v288 = vunpack.c.l.b16 %v252
        %v289 = vunpack.c.l.b16 %v253
        %v290 = vunpack.c.l.b16 %v254
        %v291 = vunpack.c.l.b16 %v255
        %v292 = vunpack.c.l.b16 %v256
        %v293 = vunpack.c.l.b16 %v257
        %v294 = vunpack.c.l.b16 %v258
        %v295 = vunpack.c.l.b16 %v259
        %v296 = vunpack.c.l.b16 %v260
        %v297 = vunpack.c.l.b16 %v261
        %v298 = vpack.c.b16 %v281, %v280
        %v299 = vpack.c.b16 %v283, %v282
        %v300 = vpack.c.b16 %v285, %v284
        %v301 = vpack.c.b16 %v287, %v286
        %v302 = vpack.c.b16 %v289, %v288
        %v303 = vpack.c.b16 %v291, %v290
        %v304 = vpack.c.b16 %v293, %v292
        %v305 = vpack.c.b16 %v295, %v294
        %v306 = vpack.c.b16 %v297, %v296
        %vm316 = vcmask 130048
        %v318 = vsel %vm316, %v243, 0
        %320 = vmatprep.subr.bf16.mxu0 0
        %321 = vmatpush1.bf16.msra.mxu0 %v298
        %322 = vmatprep.subr.bf16.mxu0 0
        %323 = vmatpush1.bf16.msra.mxu0 %v299
        %324 = vmatprep.subr.bf16.mxu0 0
        %325 = vmatpush1.bf16.msra.mxu0 %v300
        %326 = vmatprep.subr.bf16.mxu0 0
        %327 = vmatpush1.bf16.msra.mxu0 %v301
        %328 = vmatprep.subr.bf16.mxu0 0
        %329 = vmatpush1.bf16.msra.mxu0 %v302
        %330 = vmatprep.subr.bf16.mxu0 0
        %331 = vmatpush1.bf16.msra.mxu0 %v303
        %332 = vmatprep.subr.bf16.mxu0 0
        %333 = vmatpush1.bf16.msra.mxu0 %v304
        %334 = vmatprep.subr.bf16.mxu0 0
        %335 = vmatpush1.bf16.msra.mxu0 %v305
        %336 = vmatprep.subr.bf16.mxu0 0
        %337 = vmatpush1.bf16.msra.mxu0 %v306
        %338 = vmatprep.subr.bf16.mxu0 0
        %339 = vmatpush1.bf16.msra.mxu0 0
        %340 = vmatprep.subr.bf16.mxu0 0
        %341 = vmatpush1.bf16.msra.mxu0 0
        %342 = vmatprep.subr.bf16.mxu0 0
        %343 = vmatpush1.bf16.msra.mxu0 0
        %344 = vmatprep.subr.bf16.mxu0 0
        %345 = vmatpush1.bf16.msra.mxu0 0
        %346 = vmatprep.subr.bf16.mxu0 0
        %347 = vmatpush1.bf16.msra.mxu0 0
        %348 = vmatprep.subr.bf16.mxu0 0
        %349 = vmatpush1.bf16.msra.mxu0 0
        %350 = vmatprep.subr.bf16.mxu0 0
        %351 = vmatpush1.bf16.msra.mxu0 0
        %352 = vmatprep.mubr.bf16.mxu0 %v318
        %353 = vmatmul.mubr.bf16.gmra.mrb[0].mxu0 %v242
        %v354 = vpop.f32.mrb[0].mxu0
        %v355 = vadd.f32 0.0, %v354
        %v356 = vpop.f32.mrb[0].mxu0
        %v357 = vpop.f32.mrb[0].mxu0
        %v358 = vpop.f32.mrb[0].mxu0
        %359 = vdwg.mxu0
        %360 = vadd.xlane.f32.xlu0 %v355
        %v361 = vpop.xlane.xlu0 %360
        %v362 = vrcp.pop 128.0
        %v363 = vmul.f32 %v361, %v362
        %v364 = vsub.f32 %v355, %v363
        %v365 = vmul.f32 %v364, %v364
        %366 = vadd.xlane.f32.xlu0 %v365
        %v367 = vpop.xlane.xlu0 %366
        %v368 = vmul.f32 %v367, %v362
        %v369 = vadd.f32 %v368, 1e-05
        %v370 = vrsqrt.pop %v369
        %v371 = vmul.f32 %v364, %v370
        %v372 = vld [vmem:[%s2] sm:$0x1]
        %v374 = vlaneseq
        %v375 = vshrl.u32 %v374, 7
        %v376 = vsub.s32 0, %v375
        %v377 = vrot.slane %v372, %v376
        %v379 = vmul.f32 %v371, %v377
        %v380 = vld [vmem:[%s3] sm:$0x1]
        %v382 = vlaneseq
        %v383 = vshrl.u32 %v382, 7
        %v384 = vsub.s32 0, %v383
        %v385 = vrot.slane %v380, %v384
        %v387 = vadd.f32 %v379, %v385
        %388 = vst [vmem:[%s203] sm:$0xff] %v387
        %s389 = sand.u32 %s116, 1
        %s390 = scalar_lea.sflag [#allocation4], %s389
        %s391 = sand.u32 %s116, 1
        %s392 = smul.addr %s391, 8
        %s393 = scalar_lea.vmem [#allocation5], %s392
        // Predicated region
        $region41: #{tpu_custom_call.1} parent=35 // pred_check
          %p394 = pneg %p126
        $region42: #{tpu_custom_call.1} parent=35 // pred_check_branch
          %396 = sbr.rel (%p394) target = $region44
        $region43: #{tpu_custom_call.1} parent=35 // pred_region
          %s398 = ssub.s32 128, 128
          %399 = vsyncadd %s390, %s398
          %s400 = smul.addr %s19, 128
          %s401 = scalar_lea.hbm %s4, %s400
          %s403 = sshll.u32 %s393, 4
          %s404 = int_to_ptr.vmem [resolvable:$true] %s403
          %406 = dma.vmem_to_hbm [thread:$0]  %s404, 128, %s401, %s390
        $region44: #{tpu_custom_call.1} parent=35 // pred_fallthru
          _
      $region36: #{tpu_custom_call.1} parent=5 // pred_fallthru
        _
      %p407 = scmp.le.s32.totalorder 2, %s14
      // Predicated region
      $region45: #{tpu_custom_call.1} parent=5 // pred_check
        %p408 = pneg %p407
      $region46: #{tpu_custom_call.1} parent=5 // pred_check_branch
        %410 = sbr.rel (%p408) target = $region48
      $region47: #{tpu_custom_call.1} parent=5 // pred_region
        %s411 = ssub.s32 %s14, 2
        // Predicated region
        $region49: #{tpu_custom_call.1} parent=47 // pred_check
          %p412 = pneg %p132
        $region50: #{tpu_custom_call.1} parent=47 // pred_check_branch
          %414 = sbr.rel (%p412) target = $region52
        $region51: #{tpu_custom_call.1} parent=47 // pred_region
          %s415 = sand.u32 %s117, 1
          %s416 = scalar_lea.sflag [#allocation4], %s415
          %s417 = sand.u32 %s117, 1
          %s418 = smul.addr %s417, 8
          %s419 = scalar_lea.vmem [#allocation5], %s418
          %420 = dma.done %s416, 128
        $region52: #{tpu_custom_call.1} parent=47 // pred_fallthru
          _
      $region48: #{tpu_custom_call.1} parent=5 // pred_fallthru
        _
    $region6: #{tpu_custom_call.1} parent=1 // loop_footer
      %s18 = sadd.s32 1, %s14
    $region7: #{tpu_custom_call.1} parent=1 // loop_footer_branch
      %13 = sbr.rel target = $region3
    $region8: #{tpu_custom_call.1} parent=1 // loop_exit
      _
    %421 = vsyncpa [#allocation3], 1
    %s422 = scalar_lea.sflag [#allocation3], 1
    %423 = vsyncpa %s422, 1
    %424 = vsyncpa [#allocation4], 1
    %s425 = scalar_lea.sflag [#allocation4], 1
    %426 = vsyncpa %s425, 1

</llo_original>
